<compile_context>
chip_gen: v5e
topology: v5e:2x2
jax: 0.10.0
libtpu: 0.0.40
codegen_flags: <defaults>
</compile_context>

<pallas_src>
import jax
import jax.numpy as jnp
from jax import lax
from jax.experimental import pallas as pl
from jax.experimental.pallas import tpu as pltpu

_LANES = 128
_SUBLANES = 8
_MAX_BLOCK_ROWS = 4096   # (4096, 128) f32 block = 2 MiB per input buffer
_STRIP_ROWS = 512        # per-strip int32 temp: 512*128*4 B = 256 KiB


def _round_up(x, m):
    return -(-x // m) * m


def _make_kernel(block_rows, strip_rows, n_valid, needs_mask):
    """Build the per-block partial-count kernel (all geometry is static)."""
    num_strips = block_rows // strip_rows
    strip_elems = strip_rows * _LANES

    def kernel(p_ref, t_ref, out_ref):
        if needs_mask:
            # Flat element index within one strip (hoisted out of the loop).
            strip_idx = (
                lax.broadcasted_iota(jnp.int32, (strip_rows, _LANES), 0) * _LANES
                + lax.broadcasted_iota(jnp.int32, (strip_rows, _LANES), 1)
            )
            block_base = pl.program_id(0) * (block_rows * _LANES)

        def body(s, acc):
            start = pl.multiple_of(s * strip_rows, strip_rows)
            p = p_ref[pl.ds(start, strip_rows), :]
            t = t_ref[pl.ds(start, strip_rows), :]
            eq = (p > 0.5) == (t > 0.5)
            if needs_mask:
                # Slots at global flat index >= n_valid are lane padding or
                # stale data from a partial boundary block; never count them.
                limit = n_valid - (block_base + s * strip_elems)
                eq = jnp.logical_and(eq, strip_idx < limit)
            # Widen, fold to one (8, 128) slab (layout-free retiling), add.
            cnt = eq.astype(jnp.int32).reshape(
                strip_rows // _SUBLANES, _SUBLANES, _LANES)
            return acc + jnp.sum(cnt, axis=0)

        acc = lax.fori_loop(
            0, num_strips, body,
            jnp.zeros((_SUBLANES, _LANES), jnp.int32), unroll=True)
        out_ref[...] = acc[None]

    return kernel


def accuracy_calculator(predicted, target):
    """Pallas equivalent of AccuracyCalculator.forward."""
    assert predicted.shape == target.shape, "shapes must match (as in PyTorch)"
    denom = target.shape[0]        # len(target) in PyTorch == size of dim 0

    p_flat = jnp.ravel(predicted)  # layout-preserving collapse
    t_flat = jnp.ravel(target)
    n = p_flat.shape[0]

    # 2-D lane-dense view: (rows, 128).
    rows = -(-n // _LANES)
    lane_pad = rows * _LANES - n
    if lane_pad:
        # TODO(synk): a manual-DMA 1-D kernel could avoid this copy entirely;
        # only hit when n is not a multiple of 128 (<= 127 pad elements, and
        # their values are never counted thanks to in-kernel masking).
        p_flat = jnp.pad(p_flat, (0, lane_pad))
        t_flat = jnp.pad(t_flat, (0, lane_pad))
    p2d = p_flat.reshape(rows, _LANES)
    t2d = t_flat.reshape(rows, _LANES)

    # Block geometry: block_rows is always a multiple of strip_rows (and 8).
    rows8 = _round_up(rows, _SUBLANES)
    if rows8 <= _STRIP_ROWS:
        block_rows = rows8
        strip_rows = rows8
    else:
        block_rows = min(_MAX_BLOCK_ROWS, _round_up(rows8, _STRIP_ROWS))
        strip_rows = _STRIP_ROWS
    num_blocks = -(-rows // block_rows)

    # Mask only when the grid covers more element slots than actually exist
    # (lane padding and/or a partial boundary block).
    needs_mask = (num_blocks * block_rows * _LANES) != n

    kernel = _make_kernel(block_rows, strip_rows, n, needs_mask)

    partials = pl.pallas_call(
        kernel,
        out_shape=jax.ShapeDtypeStruct((num_blocks, _SUBLANES, _LANES), jnp.int32),
        grid_spec=pltpu.PrefetchScalarGridSpec(
            num_scalar_prefetch=0,
            grid=(num_blocks,),
            in_specs=[
                pl.BlockSpec((block_rows, _LANES), lambda i: (i, 0)),
                pl.BlockSpec((block_rows, _LANES), lambda i: (i, 0)),
            ],
            out_specs=pl.BlockSpec((1, _SUBLANES, _LANES), lambda i: (i, 0, 0)),
        ),
        compiler_params=pltpu.CompilerParams(
            dimension_semantics=("parallel",),
            vmem_limit_bytes=32 * 1024 * 1024,
        ),
    )(p2d, t2d)

    correct_total = jnp.sum(partials)   # tiny exact int32 reduction
    # NOTE: denom == size of dim 0 (faithful to PyTorch len(target)), so the
    # result can exceed 1 for multi-element samples, same as the spec.
    return correct_total.astype(jnp.float32) / jnp.float32(denom)


def _reference(predicted, target):
    p = predicted > 0.5
    t = target > 0.5
    correct = (p == t).astype(jnp.float32)
    return jnp.sum(correct) / jnp.float32(target.shape[0])


if __name__ == "__main__":
    key = jax.random.PRNGKey(0)

    # 1) Spec-consistent small NCHW shape (aligned, single block, no mask).
    # 2) Ragged shape (exercises lane-pad + in-kernel masking).
    # 3) Larger aligned shape (exercises the 8-strip unrolled inner loop).
    # 4) Multi-block ragged shape (grid > 1, partial boundary block + mask).
    shapes = [(2, 4, 16, 16), (3, 3, 7, 5), (2, 4, 256, 256), (2, 3, 300, 300)]

    for shape in shapes:
        kp, kt, key = jax.random.split(key, 3)
        predicted = jax.random.uniform(kp, shape, dtype=jnp.float32)
        target = jax.random.uniform(kt, shape, dtype=jnp.float32)

        acc = jax.block_until_ready(accuracy_calculator(predicted, target))
        ref = _reference(predicted, target)
        assert jnp.allclose(acc, ref, atol=1e-5, rtol=1e-5), (shape, acc, ref)

    print("KERNEL_OK")
</pallas_src>

<mosaic_0001>
module attributes {stable_mosaic.version = 11 : i64} {
  func.func @kernel(%arg0: i32, %arg1: memref<16x128xf32, #tpu.memory_space<vmem>>, %arg2: memref<16x128xf32, #tpu.memory_space<vmem>>, %arg3: memref<1x8x128xi32, #tpu.memory_space<vmem>>) attributes {dimension_semantics = [#tpu.dimension_semantics<parallel>], iteration_bounds = array<i64: 1>, scalar_prefetch = 0 : i64, scratch_operands = 0 : i64, tpu.core_type = #tpu.core_type<tc>, window_params = [{transform_indices = @transform_0, window_bounds = array<i64: 16, 128>}, {transform_indices = @transform_1, window_bounds = array<i64: 16, 128>}, {transform_indices = @transform_2, window_bounds = array<i64: 1, 8, 128>}]} {
    %c0_i32 = arith.constant 0 : i32
    %0 = vector.broadcast %c0_i32 : i32 to vector<8x128xi32>
    %c0_i32_0 = arith.constant 0 : i32
    %c16_i32 = arith.constant 16 : i32
    %1 = arith.muli %c0_i32_0, %c16_i32 : i32
    %2 = tpu.assume_multiple %1, 16 : i32
    %3 = arith.index_cast %2 : i32 to index
    %c0 = arith.constant 0 : index
    %4 = vector.load %arg1[%3, %c0] : memref<16x128xf32, #tpu.memory_space<vmem>>, vector<16x128xf32>
    %5 = arith.index_cast %2 : i32 to index
    %c0_1 = arith.constant 0 : index
    %6 = vector.load %arg2[%5, %c0_1] : memref<16x128xf32, #tpu.memory_space<vmem>>, vector<16x128xf32>
    %cst = arith.constant 5.000000e-01 : f32
    %7 = vector.broadcast %cst : f32 to vector<16x128xf32>
    %8 = arith.cmpf ogt, %4, %7 : vector<16x128xf32>
    %cst_2 = arith.constant 5.000000e-01 : f32
    %9 = vector.broadcast %cst_2 : f32 to vector<16x128xf32>
    %10 = arith.cmpf ogt, %6, %9 : vector<16x128xf32>
    %11 = arith.xori %8, %10 : vector<16x128xi1>
    %cst_3 = arith.constant dense<true> : vector<16x128xi1>
    %12 = arith.xori %11, %cst_3 : vector<16x128xi1>
    %13 = arith.extui %12 : vector<16x128xi1> to vector<16x128xi32>
    %14 = vector.shape_cast %13 : vector<16x128xi32> to vector<2x8x128xi32>
    %cst_4 = arith.constant dense<0> : vector<8x128xi32>
    %15 = vector.multi_reduction <add>, %14, %cst_4 [0] : vector<2x8x128xi32> to vector<8x128xi32>
    %16 = arith.addi %0, %15 : vector<8x128xi32>
    %c1_i32 = arith.constant 1 : i32
    %17 = vector.shape_cast %16 : vector<8x128xi32> to vector<1x8x128xi32>
    %c0_5 = arith.constant 0 : index
    %c0_6 = arith.constant 0 : index
    %c0_7 = arith.constant 0 : index
    %18 = vector.load %arg3[%c0_5, %c0_6, %c0_7] : memref<1x8x128xi32, #tpu.memory_space<vmem>>, vector<1x8x128xi32>
    tpu.vector_store %arg3[%c0_5, %c0_6, %c0_7], %17 {strides = array<i32>} : memref<1x8x128xi32, #tpu.memory_space<vmem>>, vector<1x8x128xi32>,
    return
  }
  func.func @transform_0(%arg0: i32) -> (i32, i32) {
    %c0_i32 = arith.constant 0 : i32
    %c0_i32_0 = arith.constant 0 : i32
    return %arg0, %c0_i32 : i32, i32
  }
  func.func @transform_1(%arg0: i32) -> (i32, i32) {
    %c0_i32 = arith.constant 0 : i32
    %c0_i32_0 = arith.constant 0 : i32
    return %arg0, %c0_i32 : i32, i32
  }
  func.func @transform_2(%arg0: i32) -> (i32, i32, i32) {
    %c0_i32 = arith.constant 0 : i32
    %c0_i32_0 = arith.constant 0 : i32
    %c0_i32_1 = arith.constant 0 : i32
    return %arg0, %c0_i32, %c0_i32_0 : i32, i32, i32
  }
}

</mosaic_0001>

<llo_original>
// kernel: tpu_custom_call.1
$region0: #{tpu_custom_call.1}
  #allocation0 [shape = 'u32[]', space=smem, size = 0x4, offset = 0x4, fixed_abs, tag = 'smem constant byte address 0x4 - core index']
  #allocation1 [shape = 'u32[72,128]{1,0:T(1,128)}', space=vmem, size = 0x9000, scoped, tag = 'internal scratch']
  %s0 = inlined_call_operand.hbm [shape: f32[16,128], index: 0, kind: input, shape index: {}]
  %s1 = inlined_call_operand.hbm [shape: f32[16,128], index: 1, kind: input, shape index: {}]
  %s2 = inlined_call_operand.hbm [shape: s32[1,8,128], index: 2, kind: output, shape index: {}]
  %s3 = sld [smem:[#allocation0]]
  $region26: #{tpu_custom_call.1} parent=0
    _
  %s5 = ssub.s32 1, %s3
  %s6 = scalar_select 0, %s5, %s3
  $region1: #{tpu_custom_call.1} parent=0
    #allocation2 [shape = 'u8[8192]{0}', space=vmem, size = 0x2000, scoped, tag = 'input window, operand 0, single buffered']
    #allocation3 [shape = 's32[1]{0}', space=sflag, size = 0x4, scoped, tag = 'scoped memory for tpu_custom_call.1']
    #allocation4 [shape = 's32[1]{0}', space=sflag, size = 0x4, scoped, tag = 'scoped memory for tpu_custom_call.1']
    #allocation5 [shape = 'u8[8192]{0}', space=vmem, size = 0x2000, scoped, tag = 'input window, operand 1, single buffered']
    #allocation6 [shape = 's32[1]{0}', space=sflag, size = 0x4, scoped, tag = 'scoped memory for tpu_custom_call.1']
    #allocation7 [shape = 'u8[4096]{0}', space=vmem, size = 0x1000, scoped, tag = 'output window, operand 0, single buffered']
    %7 = vsyncpa [#allocation3], 0
    %8 = vsyncpa [#allocation6], 0
    %9 = vsyncpa [#allocation4], 0
    // Predicated region
    $region2: #{tpu_custom_call.1} parent=1 // pred_check
      _
    $region3: #{tpu_custom_call.1} parent=1 // pred_check_branch
      %11 = sbr.rel (0) target = $region5
    $region4: #{tpu_custom_call.1} parent=1 // pred_region
      %13 = vsyncadd [#allocation3], 0
      %s14 = sshll.u32 %s0, 4
      %s15 = int_to_ptr.hbm [resolvable:$true] %s14
      %s16 = sshll.u32 [#allocation2], 4
      %s17 = int_to_ptr.vmem [resolvable:$true] %s16
      %22 = dma.hbm_to_vmem [thread:$0]  %s15, 256, %s17, [#allocation3], 128, 128, 8
    $region5: #{tpu_custom_call.1} parent=1 // pred_fallthru
      _
    // Predicated region
    $region6: #{tpu_custom_call.1} parent=1 // pred_check
      _
    $region7: #{tpu_custom_call.1} parent=1 // pred_check_branch
      %24 = sbr.rel (0) target = $region9
    $region8: #{tpu_custom_call.1} parent=1 // pred_region
      %26 = vsyncadd [#allocation6], 0
      %s27 = sshll.u32 %s1, 4
      %s28 = int_to_ptr.hbm [resolvable:$true] %s27
      %s29 = sshll.u32 [#allocation5], 4
      %s30 = int_to_ptr.vmem [resolvable:$true] %s29
      %35 = dma.hbm_to_vmem [thread:$0]  %s28, 256, %s30, [#allocation6], 128, 128, 8
    $region9: #{tpu_custom_call.1} parent=1 // pred_fallthru
      _
    // Predicated region
    $region10: #{tpu_custom_call.1} parent=1 // pred_check
      _
    $region11: #{tpu_custom_call.1} parent=1 // pred_check_branch
      %37 = sbr.rel (0) target = $region13
    $region12: #{tpu_custom_call.1} parent=1 // pred_region
      %39 = dma.done [#allocation3], 256
    $region13: #{tpu_custom_call.1} parent=1 // pred_fallthru
      _
    // Predicated region
    $region14: #{tpu_custom_call.1} parent=1 // pred_check
      _
    $region15: #{tpu_custom_call.1} parent=1 // pred_check_branch
      %41 = sbr.rel (0) target = $region17
    $region16: #{tpu_custom_call.1} parent=1 // pred_region
      %43 = dma.done [#allocation6], 256
    $region17: #{tpu_custom_call.1} parent=1 // pred_fallthru
      _
    %v44 = vld [vmem:[#allocation2] sm:$0xff]
    %v45 = vld [vmem:[#allocation2 + $0x8] sm:$0xff]
    %v46 = vld [vmem:[#allocation5] sm:$0xff]
    %v47 = vld [vmem:[#allocation5 + $0x8] sm:$0xff]
    %vm48 = vcmp.gt.f32.partialorder %v44, 0.5
    %vm49 = vcmp.gt.f32.partialorder %v45, 0.5
    %vm50 = vcmp.gt.f32.partialorder %v46, 0.5
    %vm51 = vcmp.gt.f32.partialorder %v47, 0.5
    %vm52 = vmxor %vm48, %vm50
    %vm53 = vmxor %vm49, %vm51
    %vm54 = vmxor %vm52, 1
    %vm55 = vmxor %vm53, 1
    %v56 = vsel %vm54, 1, 0
    %v57 = vsel %vm55, 1, 0
    %v58 = vadd.s32 %v56, %v57
    %59 = vst [vmem:[#allocation7] sm:$0xff] %v58
    // Predicated region
    $region18: #{tpu_custom_call.1} parent=1 // pred_check
      _
    $region19: #{tpu_custom_call.1} parent=1 // pred_check_branch
      %61 = sbr.rel (0) target = $region21
    $region20: #{tpu_custom_call.1} parent=1 // pred_region
      %63 = vsyncadd [#allocation4], 0
      %s65 = sshll.u32 [#allocation7], 4
      %s66 = int_to_ptr.vmem [resolvable:$true] %s65
      %s67 = sshll.u32 %s2, 4
      %s68 = int_to_ptr.hbm [resolvable:$true] %s67
      %70 = dma.vmem_to_hbm [thread:$0]  %s66, 128, %s68, [#allocation4]
    $region21: #{tpu_custom_call.1} parent=1 // pred_fallthru
      _
    // Predicated region
    $region22: #{tpu_custom_call.1} parent=1 // pred_check
      _
    $region23: #{tpu_custom_call.1} parent=1 // pred_check_branch
      %72 = sbr.rel (0) target = $region25
    $region24: #{tpu_custom_call.1} parent=1 // pred_region
      %74 = dma.done [#allocation4], 128
    $region25: #{tpu_custom_call.1} parent=1 // pred_fallthru
      _
    %75 = vsyncpa [#allocation3], 1
    %76 = vsyncpa [#allocation6], 1
    %77 = vsyncpa [#allocation4], 1

</llo_original>
